<compile_context>
chip_gen: v7x
topology: tpu7x:2x2x1
jax: 0.10.0
libtpu: 0.0.40
codegen_flags: <defaults>
</compile_context>

<pallas_src>
import jax
import jax.numpy as jnp
from jax import lax
from jax.experimental import pallas as pl
from jax.experimental.pallas import tpu as pltpu


def _make_dmon_kernel(block_b, n_clusters, num_nodes, stats_lanes):
    C = n_clusters
    N = num_nodes

    def kernel(xt_ref, a_ref, wt_ref, b_ref, assign_t_ref, stats_ref):
        wt = wt_ref[...]          # (C, F)  -- torch fc.weight layout
        bias = b_ref[...]         # (C, 1)
        ones_row = jnp.ones((1, N), jnp.float32)   # hoisted out of the bb loop

        # Loop (not static unroll) over the fused batch elements: bounds live
        # ranges so only one (N, N) tile is live at a time.
        @pl.loop(0, block_b)
        def _(bb):
            xt = xt_ref[bb]       # (F, N) f32
            a = a_ref[bb]         # (N, N) bf16 (or f32); fed to the MXU as-is.

            # fc + softmax over clusters, fully in the transposed (C, N) layout.
            # TODO(synk): dropout_rate > 0 (stateful RNG before softmax) not
            #             implemented; rate 0 (the module default) is the identity.
            logits_t = jnp.dot(wt, xt, preferred_element_type=jnp.float32) + bias  # (C, N)
            m = jnp.max(logits_t, axis=0, keepdims=True)                           # (1, N)
            e = jnp.exp(logits_t - m)                                              # (C, N)
            inv_denom = pl.reciprocal(jnp.sum(e, axis=0, keepdims=True), approx=True)
            s_t = e * inv_denom                                                    # (C, N)

            # Single MXU pass over A: rows 0..C-1 are S^T A, row C is the degree
            # vector (ones row -> column sums == row sums for symmetric A).
            s_aug = jnp.concatenate([s_t, ones_row], axis=0)                       # (C+1, N)
            as_aug = jnp.dot(s_aug.astype(a.dtype), a,
                             preferred_element_type=jnp.float32)                   # (C+1, N)
            a_s_t = as_aug[:C, :]                                                  # (C, N)
            deg = as_aug[C:, :]                                                    # (1, N)

            edge_w = jnp.sum(deg, axis=-1, keepdims=True)                          # (1, 1)

            # trace(S^T A S) = sum(S^T * (S^T A))
            tr_pooled = jnp.sum(jnp.sum(s_t * a_s_t, axis=-1, keepdims=True),
                                axis=0, keepdims=True)                             # (1, 1)
            # trace(normalizer) = sum_c (d . s_c)^2 / (2 * edge_w); exact divide
            # for this single scalar (approx reciprocal only on the softmax denom).
            dsum = jnp.sum(s_t * deg, axis=-1, keepdims=True)                      # (C, 1)
            tr_norm = jnp.sum(dsum * dsum, axis=0, keepdims=True) * 0.5 / edge_w   # (1, 1)

            cs = jnp.sum(s_t, axis=-1, keepdims=True)                              # (C, 1)

            # Lane-dense stores only: assignments stay transposed (C, N); the small
            # per-batch statistics are broadcast across lanes and packed into one
            # (C+2, stats_lanes) tile (wrapper reads lane 0).
            assign_t_ref[bb] = s_t
            row = lax.broadcasted_iota(jnp.int32, (2, stats_lanes), 0)
            scal = jnp.where(row == 0, tr_pooled - tr_norm, edge_w)                # (2, lanes)
            stats_ref[bb] = jnp.concatenate(
                [jnp.broadcast_to(cs, (C, stats_lanes)), scal], axis=0)            # (C+2, lanes)

    return kernel


def dmon_forward(A, X, W, bias, *, block_b=None, a_dtype=jnp.bfloat16):
    """DMoN forward. A:(B,N,N), X:(B,N,F), W:(C,F)=fc.weight, bias:(C,)=fc.bias.

    Returns (assignments (B,N,C), spectral_loss (B,), collapse_loss (1,)).
    Assumes a symmetric adjacency (as DMoN does): degrees are taken as column
    sums of A inside the kernel (== row sums for symmetric A).
    """
    B, N, _ = A.shape
    F = X.shape[-1]
    C = W.shape[0]

    if a_dtype is not None and A.dtype != a_dtype:
        # bf16 A halves the dominant HBM traffic for the kernel; the MXU consumes
        # bf16 natively with f32 accumulation. (Best when A is already stored in
        # bf16 upstream so this cast is a no-op.)
        A = A.astype(a_dtype)
    a_item = A.dtype.itemsize

    Xt = jnp.swapaxes(X, 1, 2).astype(jnp.float32)        # (B, F, N): node axis lane-dense
    Wt = W.astype(jnp.float32)                            # (C, F)
    bias_col = bias.astype(jnp.float32).reshape(C, 1)     # (C, 1)

    stats_lanes = 128
    per_in = N * N * a_item + N * F * Xt.dtype.itemsize
    per_out = C * N * 4 + (C + 2) * stats_lanes * 4

    if block_b is None:
        # Fuse a few batch elements per grid step to amortize the ~0.35 us/step
        # overhead, but (a) keep the per-step input payload <= ~4 MiB so the
        # double-buffered working set fits every generation's scoped-VMEM default
        # (v5e's 16 MiB is the tightest), and (b) keep grid length >= 2 when B > 1
        # so the "parallel" batch axis can shard across v7x's two TensorCores.
        target_bytes = 4 * 1024 * 1024
        bb = int(max(1, min(16, B, target_bytes // max(per_in, 1))))
        if B > 1:
            bb = min(bb, max(1, B // 2))
        while B % bb:
            bb -= 1
        block_b = bb
    assert B % block_b == 0

    compiler_kwargs = dict(dimension_semantics=("parallel",))
    vmem_needed = 2 * block_b * (per_in + per_out) + 2 * (C * F + C) * 4
    if vmem_needed > 12 * 1024 * 1024:
        # Mid-sized graphs: raise the scoped-VMEM limit (see TODO above for the
        # N-striped path that removes this requirement for very large N).
        compiler_kwargs["vmem_limit_bytes"] = int(min(vmem_needed * 5 // 4, 100 * 2**20))

    out_shapes = (
        jax.ShapeDtypeStruct((B, C, N), jnp.float32),                # assignments^T
        jax.ShapeDtypeStruct((B, C + 2, stats_lanes), jnp.float32),  # [sizes; trace; edge_w]
    )
    grid_spec = pltpu.PrefetchScalarGridSpec(
        num_scalar_prefetch=0,
        grid=(B // block_b,),
        in_specs=[
            pl.BlockSpec((block_b, F, N), lambda b: (b, 0, 0)),      # X^T
            pl.BlockSpec((block_b, N, N), lambda b: (b, 0, 0)),      # A
            pl.BlockSpec((C, F), lambda b: (0, 0)),                  # W (shared)
            pl.BlockSpec((C, 1), lambda b: (0, 0)),                  # bias (shared)
        ],
        out_specs=[
            pl.BlockSpec((block_b, C, N), lambda b: (b, 0, 0)),
            pl.BlockSpec((block_b, C + 2, stats_lanes), lambda b: (b, 0, 0)),
        ],
    )
    cost = pl.CostEstimate(
        flops=2 * B * N * (C * F + (C + 1) * N) + 12 * B * N * C,
        transcendentals=B * N * (C + 1),
        bytes_accessed=B * (per_in + per_out) + (C * F + C) * 4,
    )

    assign_t, stats = pl.pallas_call(
        _make_dmon_kernel(block_b, C, N, stats_lanes),
        out_shape=out_shapes,
        grid_spec=grid_spec,
        compiler_params=pltpu.CompilerParams(**compiler_kwargs),
        cost_estimate=cost,
    )(Xt, A, Wt, bias_col)

    # Layout plumbing only; consumers that accept (B, C, N) can skip this swap.
    assignments = jnp.swapaxes(assign_t, 1, 2)           # (B, N, C)
    cluster_sizes = stats[:, :C, 0]                      # (B, C)
    traces = stats[:, C, 0]                              # (B,)
    edge_weights = stats[:, C + 1, 0]                    # (B,)

    # NOTE: for B == 1 this equals the PyTorch expression exactly; the reference's
    # `normalizer / edge_weights` broadcast only type-checks for B == 1, so for
    # B > 1 the per-batch edge weight is used (explicit per-batch formula).
    spectral_loss = -traces / 2.0 / edge_weights / B                               # (B,)
    collapse_loss = (jnp.linalg.norm(cluster_sizes) / N
                     * jnp.sqrt(jnp.array([C], jnp.float32)) - 1.0) / B            # (1,)
    return assignments, spectral_loss, collapse_loss


def dmon_reference(A, X, W, bias):
    """Pure-JAX reference mirroring the PyTorch forward (W=(C,F), bias=(C,))."""
    B, N, _ = A.shape
    C = W.shape[0]
    s = jax.nn.softmax(jnp.einsum('bnf,cf->bnc', X, W) + bias[None, None, :], axis=-1)
    cluster_sizes = s.sum(1)
    degrees = A.sum(-1)[..., None]                            # (B, N, 1)
    edge_weights = degrees.sum((-1, -2))                      # (B,)
    st = jnp.swapaxes(s, -1, -2)
    graph_pooled = jnp.matmul(jnp.matmul(st, A), s)
    nl = jnp.matmul(st, degrees)
    nr = jnp.matmul(jnp.swapaxes(degrees, -1, -2), s)
    normalizer = jnp.matmul(nl, nr) / 2.0 / edge_weights[:, None, None]
    spectral = (-jnp.trace(graph_pooled - normalizer, axis1=-2, axis2=-1)
                / 2.0 / edge_weights / B)
    collapse = (jnp.linalg.norm(cluster_sizes) / N
                * jnp.sqrt(jnp.array([C], jnp.float32)) - 1.0) / B
    return s, spectral, collapse


if __name__ == "__main__":
    # batch=1 so the PyTorch broadcasting semantics of the loss hold exactly.
    B, N, F, C = 1, 128, 32, 8

    key = jax.random.PRNGKey(0)
    k_a, k_x, k_w, k_b = jax.random.split(key, 4)

    A = jax.random.uniform(k_a, (B, N, N), dtype=jnp.float32)
    A = 0.5 * (A + jnp.swapaxes(A, -1, -2))                   # symmetric adjacency (DMoN)
    X = jax.random.normal(k_x, (B, N, F), dtype=jnp.float32)

    # nn.Linear(n_in, n_clusters) init: weight (C, F), bias (C,), U(-1/sqrt(F), 1/sqrt(F))
    bound = 1.0 / (F ** 0.5)
    W = jax.random.uniform(k_w, (C, F), dtype=jnp.float32, minval=-bound, maxval=bound)
    bias = jax.random.uniform(k_b, (C,), dtype=jnp.float32, minval=-bound, maxval=bound)

    assignments, spectral_loss, collapse_loss = jax.block_until_ready(
        dmon_forward(A, X, W, bias))

    s_ref, sp_ref, cl_ref = dmon_reference(A, X, W, bias)
    assert assignments.shape == (B, N, C)
    assert spectral_loss.shape == (B,) and collapse_loss.shape == (1,)
    assert jnp.allclose(assignments, s_ref, rtol=5e-3, atol=5e-3)
    assert jnp.allclose(spectral_loss, sp_ref, rtol=5e-3, atol=5e-3)
    assert jnp.allclose(collapse_loss, cl_ref, rtol=5e-3, atol=5e-3)

    print("KERNEL_OK")
</pallas_src>

<mosaic_0001>
module attributes {stable_mosaic.version = 11 : i64} {
  func.func @kernel(%arg0: i32, %arg1: memref<1x32x128xf32, #tpu.memory_space<vmem>>, %arg2: memref<1x128x128xbf16, #tpu.memory_space<vmem>>, %arg3: memref<8x32xf32, #tpu.memory_space<vmem>>, %arg4: memref<8x1xf32, #tpu.memory_space<vmem>>, %arg5: memref<1x8x128xf32, #tpu.memory_space<vmem>>, %arg6: memref<1x10x128xf32, #tpu.memory_space<vmem>>) attributes {dimension_semantics = [#tpu.dimension_semantics<parallel>], iteration_bounds = array<i64: 1>, scalar_prefetch = 0 : i64, scratch_operands = 0 : i64, tpu.core_type = #tpu.core_type<tc>, window_params = [{transform_indices = @transform_0, window_bounds = array<i64: 1, 32, 128>}, {transform_indices = @transform_1, window_bounds = array<i64: 1, 128, 128>}, {pipeline_mode = #tpu.pipeline_mode<synchronous>, transform_indices = @transform_2, window_bounds = array<i64: 8, 32>}, {pipeline_mode = #tpu.pipeline_mode<synchronous>, transform_indices = @transform_3, window_bounds = array<i64: 8, 1>}, {transform_indices = @transform_4, window_bounds = array<i64: 1, 8, 128>}, {transform_indices = @transform_5, window_bounds = array<i64: 1, 10, 128>}]} {
    %c0 = arith.constant 0 : index
    %c0_0 = arith.constant 0 : index
    %0 = vector.load %arg3[%c0, %c0_0] : memref<8x32xf32, #tpu.memory_space<vmem>>, vector<8x32xf32>
    %c0_1 = arith.constant 0 : index
    %c0_2 = arith.constant 0 : index
    %1 = vector.load %arg4[%c0_1, %c0_2] : memref<8x1xf32, #tpu.memory_space<vmem>>, vector<8x1xf32>
    %cst = arith.constant 1.000000e+00 : f32
    %2 = vector.broadcast %cst : f32 to vector<1x128xf32>
    %c0_i32 = arith.constant 0 : i32
    %c1_i32 = arith.constant 1 : i32
    %3 = arith.muli %c0_i32, %c1_i32 : i32
    %c0_i32_3 = arith.constant 0 : i32
    %4 = arith.addi %c0_i32_3, %3 : i32
    %5 = arith.index_cast %4 : i32 to index
    %c0_4 = arith.constant 0 : index
    %c0_5 = arith.constant 0 : index
    %6 = vector.load %arg1[%5, %c0_4, %c0_5] : memref<1x32x128xf32, #tpu.memory_space<vmem>>, vector<1x32x128xf32>
    %7 = vector.shape_cast %6 : vector<1x32x128xf32> to vector<32x128xf32>
    %8 = arith.index_cast %4 : i32 to index
    %c0_6 = arith.constant 0 : index
    %c0_7 = arith.constant 0 : index
    %9 = vector.load %arg2[%8, %c0_6, %c0_7] : memref<1x128x128xbf16, #tpu.memory_space<vmem>>, vector<1x128x128xbf16>
    %10 = vector.shape_cast %9 : vector<1x128x128xbf16> to vector<128x128xbf16>
    %cst_8 = arith.constant dense<0.000000e+00> : vector<8x128xf32>
    %11 = tpu.matmul %0, %7, %cst_8 {dimension_numbers = #tpu.dot_dimension_numbers<[1], [0], [0], [1], [0, 0, 1, 1], [], []>} : vector<8x32xf32>, vector<32x128xf32>, vector<8x128xf32> -> vector<8x128xf32>
    %12 = vector.broadcast %1 : vector<8x1xf32> to vector<8x128xf32>
    %13 = arith.addf %11, %12 : vector<8x128xf32>
    %cst_9 = arith.constant dense<0xFF800000> : vector<128xf32>
    %14 = vector.multi_reduction <maximumf>, %13, %cst_9 [0] : vector<8x128xf32> to vector<128xf32>
    %15 = vector.shape_cast %14 : vector<128xf32> to vector<1x128xf32>
    %16 = vector.broadcast %15 : vector<1x128xf32> to vector<8x128xf32>
    %17 = arith.subf %13, %16 : vector<8x128xf32>
    %18 = math.exp %17 : vector<8x128xf32>
    %cst_10 = arith.constant dense<0.000000e+00> : vector<128xf32>
    %19 = vector.multi_reduction <add>, %18, %cst_10 [0] : vector<8x128xf32> to vector<128xf32>
    %20 = vector.shape_cast %19 : vector<128xf32> to vector<1x128xf32>
    %21 = tpu.reciprocal %20 {approx = true} : vector<1x128xf32> -> vector<1x128xf32>
    %22 = vector.broadcast %21 : vector<1x128xf32> to vector<8x128xf32>
    %23 = arith.mulf %18, %22 : vector<8x128xf32>
    %24 = tpu.concatenate %23, %2 in 0 : vector<8x128xf32>, vector<1x128xf32> -> vector<9x128xf32>
    %25 = arith.truncf %24 : vector<9x128xf32> to vector<9x128xbf16>
    %cst_11 = arith.constant dense<0.000000e+00> : vector<9x128xf32>
    %26 = tpu.matmul %25, %10, %cst_11 {dimension_numbers = #tpu.dot_dimension_numbers<[1], [0], [0], [1], [0, 0, 1, 1], [], []>} : vector<9x128xbf16>, vector<128x128xbf16>, vector<9x128xf32> -> vector<9x128xf32>
    %27 = vector.extract_strided_slice %26 {offsets = [0, 0], sizes = [8, 128], strides = [1, 1]} : vector<9x128xf32> to vector<8x128xf32>
    %28 = vector.extract_strided_slice %26 {offsets = [8, 0], sizes = [1, 128], strides = [1, 1]} : vector<9x128xf32> to vector<1x128xf32>
    %cst_12 = arith.constant dense<0.000000e+00> : vector<1xf32>
    %29 = vector.multi_reduction <add>, %28, %cst_12 [1] : vector<1x128xf32> to vector<1xf32>
    %30 = vector.shape_cast %29 : vector<1xf32> to vector<1x1xf32>
    %31 = arith.mulf %23, %27 : vector<8x128xf32>
    %cst_13 = arith.constant dense<0.000000e+00> : vector<8xf32>
    %32 = vector.multi_reduction <add>, %31, %cst_13 [1] : vector<8x128xf32> to vector<8xf32>
    %33 = vector.shape_cast %32 : vector<8xf32> to vector<8x1xf32>
    %cst_14 = arith.constant dense<0.000000e+00> : vector<1xf32>
    %34 = vector.multi_reduction <add>, %33, %cst_14 [0] : vector<8x1xf32> to vector<1xf32>
    %35 = vector.shape_cast %34 : vector<1xf32> to vector<1x1xf32>
    %36 = vector.broadcast %28 : vector<1x128xf32> to vector<8x128xf32>
    %37 = arith.mulf %23, %36 : vector<8x128xf32>
    %cst_15 = arith.constant dense<0.000000e+00> : vector<8xf32>
    %38 = vector.multi_reduction <add>, %37, %cst_15 [1] : vector<8x128xf32> to vector<8xf32>
    %39 = vector.shape_cast %38 : vector<8xf32> to vector<8x1xf32>
    %40 = arith.mulf %39, %39 : vector<8x1xf32>
    %cst_16 = arith.constant dense<0.000000e+00> : vector<1xf32>
    %41 = vector.multi_reduction <add>, %40, %cst_16 [0] : vector<8x1xf32> to vector<1xf32>
    %42 = vector.shape_cast %41 : vector<1xf32> to vector<1x1xf32>
    %cst_17 = arith.constant 5.000000e-01 : f32
    %43 = vector.broadcast %cst_17 : f32 to vector<1x1xf32>
    %44 = arith.mulf %42, %43 : vector<1x1xf32>
    %45 = arith.divf %44, %30 : vector<1x1xf32>
    %cst_18 = arith.constant dense<0.000000e+00> : vector<8xf32>
    %46 = vector.multi_reduction <add>, %23, %cst_18 [1] : vector<8x128xf32> to vector<8xf32>
    %47 = vector.shape_cast %46 : vector<8xf32> to vector<8x1xf32>
    %48 = arith.index_cast %4 : i32 to index
    %c0_19 = arith.constant 0 : index
    %c0_20 = arith.constant 0 : index
    %49 = vector.load %arg5[%48, %c0_19, %c0_20] : memref<1x8x128xf32, #tpu.memory_space<vmem>>, vector<1x8x128xf32>
    %50 = vector.shape_cast %49 : vector<1x8x128xf32> to vector<8x128xf32>
    %51 = vector.shape_cast %23 : vector<8x128xf32> to vector<1x8x128xf32>
    tpu.vector_store %arg5[%48, %c0_19, %c0_20], %51 {strides = array<i32>} : memref<1x8x128xf32, #tpu.memory_space<vmem>>, vector<1x8x128xf32>,
    %52 = tpu.iota {dimensions = array<i32: 0>} : vector<2x128xi32>
    %c0_i32_21 = arith.constant 0 : i32
    %53 = vector.broadcast %c0_i32_21 : i32 to vector<2x128xi32>
    %54 = arith.cmpi eq, %52, %53 : vector<2x128xi32>
    %55 = arith.subf %35, %45 : vector<1x1xf32>
    %56 = vector.shape_cast %55 : vector<1x1xf32> to vector<1x1xf32>
    %57 = vector.broadcast %56 : vector<1x1xf32> to vector<2x128xf32>
    %58 = vector.shape_cast %30 : vector<1x1xf32> to vector<1x1xf32>
    %59 = vector.broadcast %58 : vector<1x1xf32> to vector<2x128xf32>
    %60 = arith.select %54, %57, %59 : vector<2x128xi1>, vector<2x128xf32>
    %61 = vector.shape_cast %47 : vector<8x1xf32> to vector<8x1xf32>
    %62 = vector.broadcast %61 : vector<8x1xf32> to vector<8x128xf32>
    %63 = tpu.concatenate %62, %60 in 0 : vector<8x128xf32>, vector<2x128xf32> -> vector<10x128xf32>
    %64 = arith.index_cast %4 : i32 to index
    %c0_22 = arith.constant 0 : index
    %c0_23 = arith.constant 0 : index
    %65 = vector.load %arg6[%64, %c0_22, %c0_23] : memref<1x10x128xf32, #tpu.memory_space<vmem>>, vector<1x10x128xf32>
    %66 = vector.shape_cast %65 : vector<1x10x128xf32> to vector<10x128xf32>
    %67 = vector.shape_cast %63 : vector<10x128xf32> to vector<1x10x128xf32>
    tpu.vector_store %arg6[%64, %c0_22, %c0_23], %67 {strides = array<i32>} : memref<1x10x128xf32, #tpu.memory_space<vmem>>, vector<1x10x128xf32>,
    %c1_i32_24 = arith.constant 1 : i32
    return
  }
  func.func @transform_0(%arg0: i32) -> (i32, i32, i32) {
    %c0_i32 = arith.constant 0 : i32
    %c0_i32_0 = arith.constant 0 : i32
    %c0_i32_1 = arith.constant 0 : i32
    return %arg0, %c0_i32, %c0_i32_0 : i32, i32, i32
  }
  func.func @transform_1(%arg0: i32) -> (i32, i32, i32) {
    %c0_i32 = arith.constant 0 : i32
    %c0_i32_0 = arith.constant 0 : i32
    %c0_i32_1 = arith.constant 0 : i32
    return %arg0, %c0_i32, %c0_i32_0 : i32, i32, i32
  }
  func.func @transform_2(%arg0: i32) -> (i32, i32) {
    %c0_i32 = arith.constant 0 : i32
    %c0_i32_0 = arith.constant 0 : i32
    %c0_i32_1 = arith.constant 0 : i32
    return %c0_i32, %c0_i32_0 : i32, i32
  }
  func.func @transform_3(%arg0: i32) -> (i32, i32) {
    %c0_i32 = arith.constant 0 : i32
    %c0_i32_0 = arith.constant 0 : i32
    %c0_i32_1 = arith.constant 0 : i32
    return %c0_i32, %c0_i32_0 : i32, i32
  }
  func.func @transform_4(%arg0: i32) -> (i32, i32, i32) {
    %c0_i32 = arith.constant 0 : i32
    %c0_i32_0 = arith.constant 0 : i32
    %c0_i32_1 = arith.constant 0 : i32
    return %arg0, %c0_i32, %c0_i32_0 : i32, i32, i32
  }
  func.func @transform_5(%arg0: i32) -> (i32, i32, i32) {
    %c0_i32 = arith.constant 0 : i32
    %c0_i32_0 = arith.constant 0 : i32
    %c0_i32_1 = arith.constant 0 : i32
    return %arg0, %c0_i32, %c0_i32_0 : i32, i32, i32
  }
}

</mosaic_0001>

<llo_original>
// kernel: tpu_custom_call.1
$region0: #{tpu_custom_call.1}
  #allocation0 [shape = 'u32[]', space=smem, size = 0x4, offset = 0x4, fixed_abs, tag = 'smem constant byte address 0x4 - core index']
  #allocation1 [shape = 'u32[144,128]{1,0:T(1,128)}', space=vmem, size = 0x12000, scoped, tag = 'internal scratch']
  %s0 = inlined_call_operand.hbm [shape: f32[1,32,128], index: 0, kind: input, shape index: {}]
  %s1 = inlined_call_operand.hbm [shape: bf16[1,128,128], index: 1, kind: input, shape index: {}]
  %s2 = inlined_call_operand.vmem [shape: f32[8,32], index: 2, kind: input, shape index: {}]
  %s3 = inlined_call_operand.vmem [shape: f32[8,1], index: 3, kind: input, shape index: {}]
  %s4 = inlined_call_operand.hbm [shape: f32[1,8,128], index: 4, kind: output, shape index: {0}]
  %s5 = inlined_call_operand.vmem [shape: f32[1,10,128], index: 5, kind: output, shape index: {1}]
  %6 = xla_tuple %s4, %s5
  %s7 = sld [smem:[#allocation0]]
  $region42: #{tpu_custom_call.1} parent=0
    _
  %s9 = ssub.s32 1, %s7
  %s10 = scalar_select 0, %s9, %s7
  $region1: #{tpu_custom_call.1} parent=0
    #allocation2 [shape = 'u8[16384]{0}', space=vmem, size = 0x4000, scoped, tag = 'input window, operand 0, single buffered']
    #allocation3 [shape = 's32[1]{0}', space=sflag, size = 0x4, scoped, tag = 'scoped memory for tpu_custom_call.1']
    #allocation4 [shape = 's32[1]{0}', space=sflag, size = 0x4, scoped, tag = 'scoped memory for tpu_custom_call.1']
    #allocation5 [shape = 'u8[32768]{0}', space=vmem, size = 0x8000, scoped, tag = 'input window, operand 1, single buffered']
    #allocation6 [shape = 's32[1]{0}', space=sflag, size = 0x4, scoped, tag = 'scoped memory for tpu_custom_call.1']
    #allocation7 [shape = 'u8[4096]{0}', space=vmem, size = 0x1000, scoped, tag = 'output window, operand 0, single buffered']
    %11 = vsyncpa [#allocation3], 0
    %12 = vsyncpa [#allocation6], 0
    %13 = vsyncpa [#allocation4], 0
    // Predicated region
    $region2: #{tpu_custom_call.1} parent=1 // pred_check
      _
    $region3: #{tpu_custom_call.1} parent=1 // pred_check_branch
      %15 = sbr.rel (0) target = $region5
    $region4: #{tpu_custom_call.1} parent=1 // pred_region
      %s17 = ssub.s32 512, 512
      %18 = vsyncadd [#allocation3], %s17
      %s19 = sshll.u32 [#allocation2], 4
      %s20 = int_to_ptr.vmem [resolvable:$true] %s19
      %25 = dma.hbm_to_vmem [thread:$0]  %s0, 512, %s20, [#allocation3], 128, 128, 8
    $region5: #{tpu_custom_call.1} parent=1 // pred_fallthru
      _
    // Predicated region
    $region6: #{tpu_custom_call.1} parent=1 // pred_check
      _
    $region7: #{tpu_custom_call.1} parent=1 // pred_check_branch
      %27 = sbr.rel (0) target = $region9
    $region8: #{tpu_custom_call.1} parent=1 // pred_region
      %s29 = ssub.s32 1024, 1024
      %30 = vsyncadd [#allocation6], %s29
      %s31 = sshll.u32 [#allocation5], 4
      %s32 = int_to_ptr.vmem [resolvable:$true] %s31
      %37 = dma.hbm_to_vmem [thread:$0]  %s1, 1024, %s32, [#allocation6], 64, 64, 4
    $region9: #{tpu_custom_call.1} parent=1 // pred_fallthru
      _
    // Predicated region
    $region10: #{tpu_custom_call.1} parent=1 // pred_check
      _
    $region11: #{tpu_custom_call.1} parent=1 // pred_check_branch
      %39 = sbr.rel (0) target = $region13
    $region12: #{tpu_custom_call.1} parent=1 // pred_region
      _
    $region13: #{tpu_custom_call.1} parent=1 // pred_fallthru
      _
    // Predicated region
    $region14: #{tpu_custom_call.1} parent=1 // pred_check
      _
    $region15: #{tpu_custom_call.1} parent=1 // pred_check_branch
      %41 = sbr.rel (0) target = $region17
    $region16: #{tpu_custom_call.1} parent=1 // pred_region
      _
    $region17: #{tpu_custom_call.1} parent=1 // pred_fallthru
      _
    // Predicated region
    $region18: #{tpu_custom_call.1} parent=1 // pred_check
      _
    $region19: #{tpu_custom_call.1} parent=1 // pred_check_branch
      %43 = sbr.rel (0) target = $region21
    $region20: #{tpu_custom_call.1} parent=1 // pred_region
      %44 = dma.done [#allocation3], 512
    $region21: #{tpu_custom_call.1} parent=1 // pred_fallthru
      _
    // Predicated region
    $region22: #{tpu_custom_call.1} parent=1 // pred_check
      _
    $region23: #{tpu_custom_call.1} parent=1 // pred_check_branch
      %46 = sbr.rel (0) target = $region25
    $region24: #{tpu_custom_call.1} parent=1 // pred_region
      %47 = dma.done [#allocation6], 1024
    $region25: #{tpu_custom_call.1} parent=1 // pred_fallthru
      _
    %v49 = vld [vmem:[%s2] sm:$0xff]
    %v50 = vld [vmem:[%s3] sm:$0xff]
    %v51 = vld [vmem:[#allocation2] sm:$0xff]
    %v52 = vld [vmem:[#allocation2 + $0x8] sm:$0xff]
    %v53 = vld [vmem:[#allocation2 + $0x10] sm:$0xff]
    %v54 = vld [vmem:[#allocation2 + $0x18] sm:$0xff]
    %v55 = vld [vmem:[#allocation5] sm:$0xf]
    %v56 = vld [vmem:[#allocation5 + $0x4] sm:$0xf]
    %v57 = vld [vmem:[#allocation5 + $0x8] sm:$0xf]
    %v58 = vld [vmem:[#allocation5 + $0xc] sm:$0xf]
    %v59 = vld [vmem:[#allocation5 + $0x10] sm:$0xf]
    %v60 = vld [vmem:[#allocation5 + $0x14] sm:$0xf]
    %v61 = vld [vmem:[#allocation5 + $0x18] sm:$0xf]
    %v62 = vld [vmem:[#allocation5 + $0x1c] sm:$0xf]
    %v63 = vld [vmem:[#allocation5 + $0x20] sm:$0xf]
    %v64 = vld [vmem:[#allocation5 + $0x24] sm:$0xf]
    %v65 = vld [vmem:[#allocation5 + $0x28] sm:$0xf]
    %v66 = vld [vmem:[#allocation5 + $0x2c] sm:$0xf]
    %v67 = vld [vmem:[#allocation5 + $0x30] sm:$0xf]
    %v68 = vld [vmem:[#allocation5 + $0x34] sm:$0xf]
    %v69 = vld [vmem:[#allocation5 + $0x38] sm:$0xf]
    %v70 = vld [vmem:[#allocation5 + $0x3c] sm:$0xf]
    %72 = vset.pattern.permute.xlu0 0
    %73 = vperm.xlu0 %72, %v50
    %v74 = vpop.permute.xlu0 %73
    %vm76 = vcmask 261120
    %v78 = vsel %vm76, %v49, 0
    %80 = vmatprep.subr.mxu0 0.0
    %81 = vmatpush1.msra.mxu0 %v51
    %82 = vmatprep.subr.mxu0 0.0
    %83 = vmatpush1.msra.mxu0 %v52
    %84 = vmatprep.subr.mxu0 0.0
    %85 = vmatpush1.msra.mxu0 %v53
    %86 = vmatprep.subr.mxu0 0.0
    %87 = vmatpush1.msra.mxu0 %v54
    %88 = vmatprep.subr.mxu0 0.0
    %89 = vmatpush1.msra.mxu0 0.0
    %90 = vmatprep.subr.mxu0 0.0
    %91 = vmatpush1.msra.mxu0 0.0
    %92 = vmatprep.subr.mxu0 0.0
    %93 = vmatpush1.msra.mxu0 0.0
    %94 = vmatprep.subr.mxu0 0.0
    %95 = vmatpush1.msra.mxu0 0.0
    %96 = vmatprep.subr.mxu0 0.0
    %97 = vmatpush1.msra.mxu0 0.0
    %98 = vmatprep.subr.mxu0 0.0
    %99 = vmatpush1.msra.mxu0 0.0
    %100 = vmatprep.subr.mxu0 0.0
    %101 = vmatpush1.msra.mxu0 0.0
    %102 = vmatprep.subr.mxu0 0.0
    %103 = vmatpush1.msra.mxu0 0.0
    %104 = vmatprep.subr.mxu0 0.0
    %105 = vmatpush1.msra.mxu0 0.0
    %106 = vmatprep.subr.mxu0 0.0
    %107 = vmatpush1.msra.mxu0 0.0
    %108 = vmatprep.subr.mxu0 0.0
    %109 = vmatpush1.msra.mxu0 0.0
    %110 = vmatprep.subr.mxu0 0.0
    %111 = vmatpush1.msra.mxu0 0.0
    %112 = vmatprep.subr.mxu0 0.0
    %113 = vmatpush1.msra.mxu0 0.0
    %114 = vmatprep.subr.mxu0 0.0
    %115 = vmatpush1.msra.mxu0 0.0
    %116 = vmatprep.subr.mxu0 0.0
    %117 = vmatpush1.msra.mxu0 0.0
    %118 = vmatprep.subr.mxu0 0.0
    %119 = vmatpush1.msra.mxu0 0.0
    %120 = vmatprep.subr.mxu0 0.0
    %121 = vmatpush1.msra.mxu0 0.0
    %122 = vmatprep.subr.mxu0 0.0
    %123 = vmatpush1.msra.mxu0 0.0
    %124 = vmatprep.subr.mxu0 0.0
    %125 = vmatpush1.msra.mxu0 0.0
    %126 = vmatprep.subr.mxu0 0.0
    %127 = vmatpush1.msra.mxu0 0.0
    %128 = vmatprep.subr.mxu0 0.0
    %129 = vmatpush1.msra.mxu0 0.0
    %130 = vmatprep.subr.mxu0 0.0
    %131 = vmatpush1.msra.mxu0 0.0
    %132 = vmatprep.subr.mxu0 0.0
    %133 = vmatpush1.msra.mxu0 0.0
    %134 = vmatprep.subr.mxu0 0.0
    %135 = vmatpush1.msra.mxu0 0.0
    %136 = vmatprep.subr.mxu0 0.0
    %137 = vmatpush1.msra.mxu0 0.0
    %138 = vmatprep.subr.mxu0 0.0
    %139 = vmatpush1.msra.mxu0 0.0
    %140 = vmatprep.subr.mxu0 0.0
    %141 = vmatpush1.msra.mxu0 0.0
    %142 = vmatprep.subr.mxu0 0.0
    %143 = vmatpush1.msra.mxu0 0.0
    %144 = vmatprep.mubr.f32.mxu0 0.0
    %145 = vmatmul.mubr.f32.gmra.mrb[0].mxu0 %v78
    %v146 = vpop.f32.mrb[0].mxu0
    %v147 = vadd.f32 %v74, %v146
    %v148 = vpop.f32.mrb[0].mxu0
    %149 = vdwg.mxu0
    %v150 = vrot.slane %v147, 4
    %v151 = vmax.f32 %v147, %v150
    %v152 = vrot.slane %v151, 2
    %v153 = vmax.f32 %v151, %v152
    %v154 = vrot.slane %v153, 1
    %v155 = vmax.f32 %v153, %v154
    %v156 = vsub.f32 %v147, %v155
    %v157 = vmul.f32 %v156, 1.442695
    %v158 = vpow.pop %v157
    %v159 = vrot.slane %v158, 4
    %v160 = vadd.f32 %v158, %v159
    %v161 = vrot.slane %v160, 2
    %v162 = vadd.f32 %v160, %v161
    %v163 = vrot.slane %v162, 1
    %v164 = vadd.f32 %v162, %v163
    %v165 = vrcp.pop %v164
    %v166 = vmul.f32 %v158, %v165
    %v167 = vpack.c.bf16 1.0, %v166
    %v184 = vunpack.c.l.b16 %v55
    %v185 = vunpack.c.l.b16 %v56
    %v186 = vunpack.c.l.b16 %v57
    %v187 = vunpack.c.l.b16 %v58
    %v188 = vunpack.c.l.b16 %v59
    %v189 = vunpack.c.l.b16 %v60
    %v190 = vunpack.c.l.b16 %v61
    %v191 = vunpack.c.l.b16 %v62
    %v192 = vunpack.c.l.b16 %v63
    %v193 = vunpack.c.l.b16 %v64
    %v194 = vunpack.c.l.b16 %v65
    %v195 = vunpack.c.l.b16 %v66
    %v196 = vunpack.c.l.b16 %v67
    %v197 = vunpack.c.l.b16 %v68
    %v198 = vunpack.c.l.b16 %v69
    %v199 = vunpack.c.l.b16 %v70
    %v200 = vpack.c.b16 %v185, %v184
    %v201 = vpack.c.b16 %v187, %v186
    %v202 = vpack.c.b16 %v189, %v188
    %v203 = vpack.c.b16 %v191, %v190
    %v204 = vpack.c.b16 %v193, %v192
    %v205 = vpack.c.b16 %v195, %v194
    %v206 = vpack.c.b16 %v197, %v196
    %v207 = vpack.c.b16 %v199, %v198
    %216 = vmatprep.subr.bf16.mxu0 0
    %217 = vmatpush1.bf16.msra.mxu0 %v200
    %218 = vmatprep.subr.bf16.mxu0 0
    %219 = vmatpush1.bf16.msra.mxu0 %v201
    %220 = vmatprep.subr.bf16.mxu0 0
    %221 = vmatpush1.bf16.msra.mxu0 %v202
    %222 = vmatprep.subr.bf16.mxu0 0
    %223 = vmatpush1.bf16.msra.mxu0 %v203
    %224 = vmatprep.subr.bf16.mxu0 0
    %225 = vmatpush1.bf16.msra.mxu0 %v204
    %226 = vmatprep.subr.bf16.mxu0 0
    %227 = vmatpush1.bf16.msra.mxu0 %v205
    %228 = vmatprep.subr.bf16.mxu0 0
    %229 = vmatpush1.bf16.msra.mxu0 %v206
    %230 = vmatprep.subr.bf16.mxu0 0
    %231 = vmatpush1.bf16.msra.mxu0 %v207
    %232 = vmatprep.subr.bf16.mxu0 0
    %233 = vmatpush1.bf16.msra.mxu0 0
    %234 = vmatprep.subr.bf16.mxu0 0
    %235 = vmatpush1.bf16.msra.mxu0 0
    %236 = vmatprep.subr.bf16.mxu0 0
    %237 = vmatpush1.bf16.msra.mxu0 0
    %238 = vmatprep.subr.bf16.mxu0 0
    %239 = vmatpush1.bf16.msra.mxu0 0
    %240 = vmatprep.subr.bf16.mxu0 0
    %241 = vmatpush1.bf16.msra.mxu0 0
    %242 = vmatprep.subr.bf16.mxu0 0
    %243 = vmatpush1.bf16.msra.mxu0 0
    %244 = vmatprep.subr.bf16.mxu0 0
    %245 = vmatpush1.bf16.msra.mxu0 0
    %246 = vmatprep.subr.bf16.mxu0 0
    %247 = vmatpush1.bf16.msra.mxu0 0
    %248 = vmatprep.mubr.bf16.mxu0 0
    %249 = vmatmul.mubr.bf16.gmra.mrb[0].mxu0 %v167
    %v250 = vpop.f32.mrb[0].mxu0
    %v251 = vadd.f32 0.0, %v250
    %v252 = vpop.f32.mrb[0].mxu0
    %v253 = vpop.f32.mrb[0].mxu0
    %v254 = vadd.f32 0.0, %v253
    %v255 = vpop.f32.mrb[0].mxu0
    %256 = vdwg.mxu0
    %vm257 = vcmask 1040384
    %v258 = vsel %vm257, %v254, 0.0
    %259 = vadd.xlane.f32.xlu0 %v258
    %v260 = vpop.xlane.xlu0 %259
    %v261 = vmul.f32 %v166, %v251
    %262 = vadd.xlane.f32.xlu0 %v261
    %v263 = vpop.xlane.xlu0 %262
    %v264 = vrot.slane %v263, 4
    %v265 = vadd.f32 %v263, %v264
    %v266 = vrot.slane %v265, 2
    %v267 = vadd.f32 %v265, %v266
    %v268 = vrot.slane %v267, 1
    %v269 = vadd.f32 %v267, %v268
    %v270 = vlaneseq
    %v271 = vshrl.u32 %v270, 7
    %v272 = vsub.s32 0, %v271
    %v273 = vrot.slane %v254, %v272
    %v274 = vmul.f32 %v166, %v273
    %275 = vadd.xlane.f32.xlu0 %v274
    %v276 = vpop.xlane.xlu0 %275
    %v277 = vmul.f32 %v276, %v276
    %v278 = vrot.slane %v277, 4
    %v279 = vadd.f32 %v277, %v278
    %v280 = vrot.slane %v279, 2
    %v281 = vadd.f32 %v279, %v280
    %v282 = vrot.slane %v281, 1
    %v283 = vadd.f32 %v281, %v282
    %v284 = vmul.f32 %v283, 0.5
    %v285 = vrcp.pop %v260
    %v286 = vmul.f32 %v284, %v285
    %287 = vadd.xlane.f32.xlu0 %v166
    %v288 = vpop.xlane.xlu0 %287
    %289 = vst [vmem:[#allocation7] sm:$0xff] %v166
    %v290 = vlaneseq
    %v291 = vshrl.u32 %v290, 7
    %vm292 = vcmp.eq.s32.totalorder %v291, 0
    %v293 = vsub.f32 %v269, %v286
    %v294 = vlaneseq
    %v295 = vshrl.u32 %v294, 7
    %v296 = vsub.s32 0, %v295
    %v297 = vrot.slane %v293, %v296
    %v298 = vlaneseq
    %v299 = vshrl.u32 %v298, 7
    %v300 = vsub.s32 0, %v299
    %v301 = vrot.slane %v260, %v300
    %v302 = vsel %vm292, %v297, %v301
    %303 = vst [vmem:[%s5] sm:$0xff] %v288
    %304 = vst [vmem:[%s5 + $0x8] sm:$0x3] %v302
    // Predicated region
    $region26: #{tpu_custom_call.1} parent=1 // pred_check
      _
    $region27: #{tpu_custom_call.1} parent=1 // pred_check_branch
      %306 = sbr.rel (0) target = $region29
    $region28: #{tpu_custom_call.1} parent=1 // pred_region
      %s308 = ssub.s32 128, 128
      %309 = vsyncadd [#allocation4], %s308
      %s311 = sshll.u32 [#allocation7], 4
      %s312 = int_to_ptr.vmem [resolvable:$true] %s311
      %314 = dma.vmem_to_hbm [thread:$0]  %s312, 128, %s4, [#allocation4]
    $region29: #{tpu_custom_call.1} parent=1 // pred_fallthru
      _
    // Predicated region
    $region30: #{tpu_custom_call.1} parent=1 // pred_check
      _
    $region31: #{tpu_custom_call.1} parent=1 // pred_check_branch
      %316 = sbr.rel (0) target = $region33
    $region32: #{tpu_custom_call.1} parent=1 // pred_region
      _
    $region33: #{tpu_custom_call.1} parent=1 // pred_fallthru
      _
    // Predicated region
    $region34: #{tpu_custom_call.1} parent=1 // pred_check
      _
    $region35: #{tpu_custom_call.1} parent=1 // pred_check_branch
      %318 = sbr.rel (0) target = $region37
    $region36: #{tpu_custom_call.1} parent=1 // pred_region
      %319 = dma.done [#allocation4], 128
    $region37: #{tpu_custom_call.1} parent=1 // pred_fallthru
      _
    // Predicated region
    $region38: #{tpu_custom_call.1} parent=1 // pred_check
      _
    $region39: #{tpu_custom_call.1} parent=1 // pred_check_branch
      %321 = sbr.rel (0) target = $region41
    $region40: #{tpu_custom_call.1} parent=1 // pred_region
      _
    $region41: #{tpu_custom_call.1} parent=1 // pred_fallthru
      _
    %322 = vsyncpa [#allocation3], 1
    %323 = vsyncpa [#allocation6], 1
    %324 = vsyncpa [#allocation4], 1

</llo_original>
